<compile_context>
chip_gen: v7x
topology: tpu7x:2x2x1
jax: 0.10.0
libtpu: 0.0.40
codegen_flags: <defaults>
</compile_context>

<pallas_src>
import functools

import jax
import jax.numpy as jnp
from jax import lax
from jax.experimental import pallas as pl
from jax.experimental.pallas import tpu as pltpu

_LANE = 128


def _device_kind() -> str:
    try:
        return jax.devices()[0].device_kind.lower()
    except Exception:
        return ""


_KIND = _device_kind()
_IS_TWO_CORE = ("v7" in _KIND) or ("7x" in _KIND)        # v7x: 2 TensorCores/chip
if ("v6" in _KIND) or _IS_TWO_CORE:
    _TILE_ROWS_CAP = 8192                                 # 4 MiB f32 per input block
    # v7x has 64 MiB physical VMEM per TC, v6e has 128 MiB: leave headroom.
    _VMEM_LIMIT = (48 if _IS_TWO_CORE else 64) * 1024 * 1024
else:                                                     # v5e / v5p / v4 / unknown
    _TILE_ROWS_CAP = 4096                                 # 2 MiB f32 per input block
    _VMEM_LIMIT = 32 * 1024 * 1024                        # raise v5e's 16 MiB default


def _dice_kernel(yt_ref, yp_ref, out_ref, inter_acc, sum_acc, *,
                 rows, tile_rows, tiles_per_core, needs_mask, split):
    if split:
        c = pl.program_id(0)                 # core axis (CORE_PARALLEL on v7x)
        j = pl.program_id(1)                 # row-tile reduction axis
        last_j = pl.num_programs(1) - 1
    else:
        c = 0
        j = pl.program_id(0)
        last_j = pl.num_programs(0) - 1

    @pl.when(j == 0)
    def _():
        inter_acc[...] = jnp.zeros_like(inter_acc)
        sum_acc[...] = jnp.zeros_like(sum_acc)

    yt = yt_ref[...].astype(jnp.float32)
    yp = yp_ref[...].astype(jnp.float32)

    if needs_mask:  # static python bool; zero cost on aligned inputs
        row_base = (c * tiles_per_core + j) * tile_rows
        row_ids = lax.broadcasted_iota(jnp.int32, (tile_rows, _LANE), 0) + row_base
        valid = row_ids < rows
        yt = jnp.where(valid, yt, 0.0)
        yp = jnp.where(valid, yp, 0.0)

    # (tile_rows,128) -> (groups,8,128) is (8,128)-tile aligned => no relayout;
    # the axis-0 sums are pure vreg-wise adds feeding a single-vreg accumulator.
    groups = tile_rows // 8                  # tile_rows is always a multiple of 8
    inter_acc[...] += jnp.sum((yt * yp).reshape(groups, 8, _LANE), axis=0)
    sum_acc[...] += jnp.sum((yt + yp).reshape(groups, 8, _LANE), axis=0)

    @pl.when(j == last_j)
    def _():
        inter_s = jnp.sum(inter_acc[...])
        sum_s = jnp.sum(sum_acc[...])
        sub = lax.broadcasted_iota(jnp.int32, (8, _LANE), 0)
        lane = lax.broadcasted_iota(jnp.int32, (8, _LANE), 1)
        out_ref[0] = (jnp.where((sub == 0) & (lane == 0), inter_s, 0.0)
                      + jnp.where((sub == 0) & (lane == 1), sum_s, 0.0))


def _round_up(x, m):
    return (x + m - 1) // m * m


def _round_down(x, m):
    return x // m * m


def _slab_dtype(x):
    # bool labels: ship as bf16 (exact for {0,1}); in-kernel cast to f32.
    return jnp.bfloat16 if x.dtype == jnp.bool_ else x.dtype


def _sublane_quantum(dtype):
    return max(8, 32 // jnp.dtype(dtype).itemsize)


def _to_slab(x, slab_dtype, padded_total):
    flat = jnp.ravel(x)                      # layout-preserving, keeps native dtype
    if flat.dtype != slab_dtype:
        flat = flat.astype(slab_dtype)
    pad = padded_total - flat.shape[0]
    if pad:
        # Zero padding (< one lane row in practice) does not change any sum.
        # TODO(synk): a fully copy-free ragged tail would need a manual-DMA
        # (memory_space=pl.ANY) path; not worth it for <128 trailing elements.
        flat = jnp.pad(flat, (0, pad))
    return flat.reshape(-1, _LANE)


@jax.jit
def dice_loss(y_pred, y_true):
    """Pallas implementation of CriterionDice.forward: returns scalar f32."""
    total = y_pred.size
    assert y_true.size == total, "y_pred and y_true must have equal numel"

    yt_dt = _slab_dtype(y_true)
    yp_dt = _slab_dtype(y_pred)
    sub_q = max(_sublane_quantum(yt_dt), _sublane_quantum(yp_dt))

    # Pad only to lane alignment (plus one sublane quantum of rows for tiny
    # inputs); 128-aligned inputs pass through copy-free.
    padded_total = max(_round_up(total, _LANE), sub_q * _LANE)
    yt2d = _to_slab(y_true, yt_dt, padded_total)
    yp2d = _to_slab(y_pred, yp_dt, padded_total)
    rows = padded_total // _LANE

    tile_rows = min(_TILE_ROWS_CAP, _round_down(rows, sub_q))
    n_tiles = pl.cdiv(rows, tile_rows)

    split = _IS_TWO_CORE and n_tiles >= 2
    if split:
        tiles_per_core = pl.cdiv(n_tiles, 2)
        n_blocks = 2 * tiles_per_core
        last_tile = n_tiles - 1
        grid = (2, tiles_per_core)
        semantics = (pltpu.CORE_PARALLEL, pltpu.ARBITRARY)

        def idx_map(c, j):
            # Clamp so the DMA never addresses a fully out-of-range block; the
            # in-kernel row mask zeroes duplicated / ragged contributions.
            return (jnp.minimum(c * tiles_per_core + j, last_tile), 0)

        out_map = lambda c, j: (c, 0, 0)
        n_out = 2
    else:
        tiles_per_core = n_tiles
        n_blocks = n_tiles
        grid = (n_tiles,)
        semantics = (pltpu.ARBITRARY,)

        def idx_map(j):
            return (j, 0)

        out_map = lambda j: (0, 0, 0)
        n_out = 1

    needs_mask = (n_blocks * tile_rows) != rows
    # Invariant: whenever a clamped-duplicate or partial edge block exists, the
    # in-kernel row mask must be enabled (stale VMEM is zeroed only by it).
    assert needs_mask or (n_blocks == n_tiles and rows % tile_rows == 0)

    kernel = functools.partial(
        _dice_kernel, rows=rows, tile_rows=tile_rows,
        tiles_per_core=tiles_per_core, needs_mask=needs_mask, split=split)

    bytes_in = int(yt2d.size * yt2d.dtype.itemsize
                   + yp2d.size * yp2d.dtype.itemsize)

    out = pl.pallas_call(
        kernel,
        out_shape=jax.ShapeDtypeStruct((n_out, 8, _LANE), jnp.float32),
        grid_spec=pltpu.PrefetchScalarGridSpec(
            num_scalar_prefetch=0,
            grid=grid,
            in_specs=[
                pl.BlockSpec((tile_rows, _LANE), idx_map),
                pl.BlockSpec((tile_rows, _LANE), idx_map),
            ],
            out_specs=pl.BlockSpec((1, 8, _LANE), out_map),
            scratch_shapes=[
                pltpu.VMEM((8, _LANE), jnp.float32),   # sum(t * p) partials
                pltpu.VMEM((8, _LANE), jnp.float32),   # sum(t) + sum(p) partials
            ],
        ),
        compiler_params=pltpu.CompilerParams(
            dimension_semantics=semantics,
            vmem_limit_bytes=_VMEM_LIMIT,
        ),
        cost_estimate=pl.CostEstimate(
            flops=4 * total, transcendentals=0, bytes_accessed=bytes_in),
    )(yt2d, yp2d)

    combined = jnp.sum(out, axis=0)          # merge the core halves: (8, 128)
    inter = combined[0, 0]
    tp_sum = combined[0, 1]                  # sum(t) + sum(p)

    smooth = jnp.float32(1.0)
    dice_coef = 2.0 * (inter + smooth) / (tp_sum + smooth)
    return (1.0 - dice_coef).astype(jnp.float32)


def _reference(y_pred, y_true):
    smooth = 1.0
    t = jnp.ravel(y_true).astype(jnp.float32)
    p = jnp.ravel(y_pred).astype(jnp.float32)
    inter = jnp.sum(t * p)
    dice = 2.0 * (inter + smooth) / (jnp.sum(t) + jnp.sum(p) + smooth)
    return 1.0 - dice


if __name__ == "__main__":
    key = jax.random.PRNGKey(0)
    k1, k2, k3, k4 = jax.random.split(key, 4)

    # NCHW predictions / labels, as in the segmentation setting.
    y_pred = jax.nn.sigmoid(jax.random.normal(k1, (2, 4, 16, 16), jnp.float32))
    y_true = (jax.random.uniform(k2, (2, 4, 16, 16)) > 0.5).astype(jnp.float32)
    loss = dice_loss(y_pred, y_true)
    jax.block_until_ready(loss)
    ref = _reference(y_pred, y_true)
    assert jnp.allclose(loss, ref, rtol=1e-5, atol=1e-5), (loss, ref)

    # Ragged shape: exercises lane padding + in-kernel row masking.
    y_pred2 = jax.nn.sigmoid(jax.random.normal(k3, (3, 5, 17, 13), jnp.float32))
    y_true2 = (jax.random.uniform(k4, (3, 5, 17, 13)) > 0.5).astype(jnp.float32)
    loss2 = dice_loss(y_pred2, y_true2)
    jax.block_until_ready(loss2)
    ref2 = _reference(y_pred2, y_true2)
    assert jnp.allclose(loss2, ref2, rtol=1e-5, atol=1e-5), (loss2, ref2)

    # Boolean labels: exercises the bf16 label slab + mixed-dtype blocks.
    y_true3 = jax.random.uniform(k2, (2, 4, 16, 16)) > 0.5
    loss3 = dice_loss(y_pred, y_true3)
    jax.block_until_ready(loss3)
    ref3 = _reference(y_pred, y_true3)
    assert jnp.allclose(loss3, ref3, rtol=1e-5, atol=1e-5), (loss3, ref3)

    print("KERNEL_OK")
</pallas_src>

<mosaic_0001>
module attributes {stable_mosaic.version = 11 : i64} {
  func.func @_dice_kernel(%arg0: i32, %arg1: memref<16x128xf32, #tpu.memory_space<vmem>>, %arg2: memref<16x128xf32, #tpu.memory_space<vmem>>, %arg3: memref<1x8x128xf32, #tpu.memory_space<vmem>>, %arg4: memref<8x128xf32, #tpu.memory_space<vmem>>, %arg5: memref<8x128xf32, #tpu.memory_space<vmem>>) attributes {dimension_semantics = [#tpu.dimension_semantics<arbitrary>], iteration_bounds = array<i64: 1>, scalar_prefetch = 0 : i64, scratch_operands = 2 : i64, tpu.core_type = #tpu.core_type<tc>, window_params = [{transform_indices = @transform_0, window_bounds = array<i64: 16, 128>}, {transform_indices = @transform_1, window_bounds = array<i64: 16, 128>}, {pipeline_mode = #tpu.pipeline_mode<synchronous>, transform_indices = @transform_2, window_bounds = array<i64: 1, 8, 128>}]} {
    %c0_i32 = arith.constant 0 : i32
    %0 = arith.cmpi eq, %arg0, %c0_i32 : i32
    %1 = arith.extui %0 : i1 to i32
    %c0_i32_0 = arith.constant 0 : i32
    %2 = arith.cmpi ne, %1, %c0_i32_0 : i32
    scf.if %2 {
      %cst_15 = arith.constant 0.000000e+00 : f32
      %20 = vector.broadcast %cst_15 : f32 to vector<8x128xf32>
      %c0_16 = arith.constant 0 : index
      %c0_17 = arith.constant 0 : index
      %21 = vector.load %arg4[%c0_16, %c0_17] : memref<8x128xf32, #tpu.memory_space<vmem>>, vector<8x128xf32>
      tpu.vector_store %arg4[%c0_16, %c0_17], %20 {strides = array<i32>} : memref<8x128xf32, #tpu.memory_space<vmem>>, vector<8x128xf32>,
      %cst_18 = arith.constant 0.000000e+00 : f32
      %22 = vector.broadcast %cst_18 : f32 to vector<8x128xf32>
      %c0_19 = arith.constant 0 : index
      %c0_20 = arith.constant 0 : index
      %23 = vector.load %arg5[%c0_19, %c0_20] : memref<8x128xf32, #tpu.memory_space<vmem>>, vector<8x128xf32>
      tpu.vector_store %arg5[%c0_19, %c0_20], %22 {strides = array<i32>} : memref<8x128xf32, #tpu.memory_space<vmem>>, vector<8x128xf32>,
    } else {
    }
    %c0 = arith.constant 0 : index
    %c0_1 = arith.constant 0 : index
    %3 = vector.load %arg1[%c0, %c0_1] : memref<16x128xf32, #tpu.memory_space<vmem>>, vector<16x128xf32>
    %c0_2 = arith.constant 0 : index
    %c0_3 = arith.constant 0 : index
    %4 = vector.load %arg2[%c0_2, %c0_3] : memref<16x128xf32, #tpu.memory_space<vmem>>, vector<16x128xf32>
    %c0_4 = arith.constant 0 : index
    %c0_5 = arith.constant 0 : index
    %5 = vector.load %arg4[%c0_4, %c0_5] : memref<8x128xf32, #tpu.memory_space<vmem>>, vector<8x128xf32>
    %6 = arith.mulf %3, %4 : vector<16x128xf32>
    %7 = vector.shape_cast %6 : vector<16x128xf32> to vector<2x8x128xf32>
    %cst = arith.constant dense<0.000000e+00> : vector<8x128xf32>
    %8 = vector.multi_reduction <add>, %7, %cst [0] : vector<2x8x128xf32> to vector<8x128xf32>
    %9 = arith.addf %5, %8 : vector<8x128xf32>
    %c0_6 = arith.constant 0 : index
    %c0_7 = arith.constant 0 : index
    %10 = vector.load %arg4[%c0_6, %c0_7] : memref<8x128xf32, #tpu.memory_space<vmem>>, vector<8x128xf32>
    tpu.vector_store %arg4[%c0_6, %c0_7], %9 {strides = array<i32>} : memref<8x128xf32, #tpu.memory_space<vmem>>, vector<8x128xf32>,
    %c0_8 = arith.constant 0 : index
    %c0_9 = arith.constant 0 : index
    %11 = vector.load %arg5[%c0_8, %c0_9] : memref<8x128xf32, #tpu.memory_space<vmem>>, vector<8x128xf32>
    %12 = arith.addf %3, %4 : vector<16x128xf32>
    %13 = vector.shape_cast %12 : vector<16x128xf32> to vector<2x8x128xf32>
    %cst_10 = arith.constant dense<0.000000e+00> : vector<8x128xf32>
    %14 = vector.multi_reduction <add>, %13, %cst_10 [0] : vector<2x8x128xf32> to vector<8x128xf32>
    %15 = arith.addf %11, %14 : vector<8x128xf32>
    %c0_11 = arith.constant 0 : index
    %c0_12 = arith.constant 0 : index
    %16 = vector.load %arg5[%c0_11, %c0_12] : memref<8x128xf32, #tpu.memory_space<vmem>>, vector<8x128xf32>
    tpu.vector_store %arg5[%c0_11, %c0_12], %15 {strides = array<i32>} : memref<8x128xf32, #tpu.memory_space<vmem>>, vector<8x128xf32>,
    %c0_i32_13 = arith.constant 0 : i32
    %17 = arith.cmpi eq, %arg0, %c0_i32_13 : i32
    %18 = arith.extui %17 : i1 to i32
    %c0_i32_14 = arith.constant 0 : i32
    %19 = arith.cmpi ne, %18, %c0_i32_14 : i32
    scf.if %19 {
      %c0_15 = arith.constant 0 : index
      %c0_16 = arith.constant 0 : index
      %20 = vector.load %arg4[%c0_15, %c0_16] : memref<8x128xf32, #tpu.memory_space<vmem>>, vector<8x128xf32>
      %21 = vector.shape_cast %20 : vector<8x128xf32> to vector<1x8x128xf32>
      %cst_17 = arith.constant dense<0.000000e+00> : vector<1xf32>
      %22 = vector.multi_reduction <add>, %21, %cst_17 [1, 2] : vector<1x8x128xf32> to vector<1xf32>
      %23 = vector.shape_cast %22 : vector<1xf32> to vector<1x1x1xf32>
      %24 = vector.extract %23[0, 0, 0] : f32 from vector<1x1x1xf32>
      %c0_18 = arith.constant 0 : index
      %c0_19 = arith.constant 0 : index
      %25 = vector.load %arg5[%c0_18, %c0_19] : memref<8x128xf32, #tpu.memory_space<vmem>>, vector<8x128xf32>
      %26 = vector.shape_cast %25 : vector<8x128xf32> to vector<1x8x128xf32>
      %cst_20 = arith.constant dense<0.000000e+00> : vector<1xf32>
      %27 = vector.multi_reduction <add>, %26, %cst_20 [1, 2] : vector<1x8x128xf32> to vector<1xf32>
      %28 = vector.shape_cast %27 : vector<1xf32> to vector<1x1x1xf32>
      %29 = vector.extract %28[0, 0, 0] : f32 from vector<1x1x1xf32>
      %30 = tpu.iota {dimensions = array<i32: 0>} : vector<8x128xi32>
      %31 = tpu.iota {dimensions = array<i32: 1>} : vector<8x128xi32>
      %c0_i32_21 = arith.constant 0 : i32
      %32 = vector.broadcast %c0_i32_21 : i32 to vector<8x128xi32>
      %33 = arith.cmpi eq, %30, %32 : vector<8x128xi32>
      %c0_i32_22 = arith.constant 0 : i32
      %34 = vector.broadcast %c0_i32_22 : i32 to vector<8x128xi32>
      %35 = arith.cmpi eq, %31, %34 : vector<8x128xi32>
      %36 = arith.andi %33, %35 : vector<8x128xi1>
      %cst_23 = arith.constant 0.000000e+00 : f32
      %37 = vector.broadcast %24 : f32 to vector<8x128xf32>
      %38 = vector.broadcast %cst_23 : f32 to vector<8x128xf32>
      %39 = arith.select %36, %37, %38 : vector<8x128xi1>, vector<8x128xf32>
      %c0_i32_24 = arith.constant 0 : i32
      %40 = vector.broadcast %c0_i32_24 : i32 to vector<8x128xi32>
      %41 = arith.cmpi eq, %30, %40 : vector<8x128xi32>
      %c1_i32 = arith.constant 1 : i32
      %42 = vector.broadcast %c1_i32 : i32 to vector<8x128xi32>
      %43 = arith.cmpi eq, %31, %42 : vector<8x128xi32>
      %44 = arith.andi %41, %43 : vector<8x128xi1>
      %cst_25 = arith.constant 0.000000e+00 : f32
      %45 = vector.broadcast %29 : f32 to vector<8x128xf32>
      %46 = vector.broadcast %cst_25 : f32 to vector<8x128xf32>
      %47 = arith.select %44, %45, %46 : vector<8x128xi1>, vector<8x128xf32>
      %48 = arith.addf %39, %47 : vector<8x128xf32>
      %c0_26 = arith.constant 0 : index
      %c0_27 = arith.constant 0 : index
      %c0_28 = arith.constant 0 : index
      %49 = vector.load %arg3[%c0_26, %c0_27, %c0_28] : memref<1x8x128xf32, #tpu.memory_space<vmem>>, vector<1x8x128xf32>
      %50 = vector.shape_cast %49 : vector<1x8x128xf32> to vector<8x128xf32>
      %51 = vector.shape_cast %48 : vector<8x128xf32> to vector<1x8x128xf32>
      tpu.vector_store %arg3[%c0_26, %c0_27, %c0_28], %51 {strides = array<i32>} : memref<1x8x128xf32, #tpu.memory_space<vmem>>, vector<1x8x128xf32>,
    } else {
    }
    return
  }
  func.func @transform_0(%arg0: i32) -> (i32, i32) {
    %c0_i32 = arith.constant 0 : i32
    %c0_i32_0 = arith.constant 0 : i32
    return %arg0, %c0_i32 : i32, i32
  }
  func.func @transform_1(%arg0: i32) -> (i32, i32) {
    %c0_i32 = arith.constant 0 : i32
    %c0_i32_0 = arith.constant 0 : i32
    return %arg0, %c0_i32 : i32, i32
  }
  func.func @transform_2(%arg0: i32) -> (i32, i32, i32) {
    %c0_i32 = arith.constant 0 : i32
    %c0_i32_0 = arith.constant 0 : i32
    %c0_i32_1 = arith.constant 0 : i32
    %c0_i32_2 = arith.constant 0 : i32
    return %c0_i32, %c0_i32_0, %c0_i32_1 : i32, i32, i32
  }
}

</mosaic_0001>

<llo_original>
// kernel: dice_loss.1
$region0: #{dice_loss.1}
  #allocation0 [shape = 'u32[]', space=smem, size = 0x4, offset = 0x4, fixed_abs, tag = 'smem constant byte address 0x4 - core index']
  #allocation1 [shape = 'u32[144,128]{1,0:T(1,128)}', space=vmem, size = 0x12000, scoped, tag = 'internal scratch']
  #allocation2 [shape = 'f32[8,128]{1,0:T(8,128)}', space=vmem, size = 0x1000, scoped, tag = 'scratch operand']
  #allocation3 [shape = 'f32[8,128]{1,0:T(8,128)}', space=vmem, size = 0x1000, scoped, tag = 'scratch operand']
  %s0 = inlined_call_operand.vmem [shape: f32[16,128], index: 0, kind: input, shape index: {}]
  %s1 = inlined_call_operand.vmem [shape: f32[16,128], index: 1, kind: input, shape index: {}]
  %s2 = inlined_call_operand.vmem [shape: f32[1,8,128], index: 2, kind: output, shape index: {}]
  %s3 = sld [smem:[#allocation0]]
  $region26: #{dice_loss.1} parent=0
    _
  %s5 = ssub.s32 1, %s3
  %s6 = scalar_select 0, %s5, %s3
  // Predicated region
  $region2: #{dice_loss.1} parent=0 // pred_check
    _
  $region3: #{dice_loss.1} parent=0 // pred_check_branch
    %8 = sbr.rel (0) target = $region5
  $region4: #{dice_loss.1} parent=0 // pred_region
    _
  $region5: #{dice_loss.1} parent=0 // pred_fallthru
    _
  // Predicated region
  $region6: #{dice_loss.1} parent=0 // pred_check
    _
  $region7: #{dice_loss.1} parent=0 // pred_check_branch
    %10 = sbr.rel (0) target = $region9
  $region8: #{dice_loss.1} parent=0 // pred_region
    _
  $region9: #{dice_loss.1} parent=0 // pred_fallthru
    _
  %p11 = scmp.eq.s32.totalorder 0, 0
  // Predicated region
  $region10: #{dice_loss.1} parent=0 // pred_check
    %p12 = pneg %p11
  $region11: #{dice_loss.1} parent=0 // pred_check_branch
    %14 = sbr.rel (%p12) target = $region13
  $region12: #{dice_loss.1} parent=0 // pred_region
    %15 = vst [vmem:[#allocation2] sm:$0xff] 0.0
    %16 = vst [vmem:[#allocation3] sm:$0xff] 0.0
  $region13: #{dice_loss.1} parent=0 // pred_fallthru
    _
  %v17 = vld [vmem:[%s0] sm:$0xff]
  %v18 = vld [vmem:[%s0 + $0x8] sm:$0xff]
  %v19 = vld [vmem:[%s1] sm:$0xff]
  %v20 = vld [vmem:[%s1 + $0x8] sm:$0xff]
  %v21 = vld [vmem:[#allocation2] sm:$0xff]
  %v22 = vmul.f32 %v17, %v19
  %v23 = vmul.f32 %v18, %v20
  %v24 = vadd.f32 %v22, %v23
  %v25 = vadd.f32 %v21, %v24
  %26 = vst [vmem:[#allocation2] sm:$0xff] %v25
  %v27 = vld [vmem:[#allocation3] sm:$0xff]
  %v28 = vadd.f32 %v17, %v19
  %v29 = vadd.f32 %v18, %v20
  %v30 = vadd.f32 %v28, %v29
  %v31 = vadd.f32 %v27, %v30
  %32 = vst [vmem:[#allocation3] sm:$0xff] %v31
  // Predicated region
  $region14: #{dice_loss.1} parent=0 // pred_check
    %p33 = pneg %p11
  $region15: #{dice_loss.1} parent=0 // pred_check_branch
    %35 = sbr.rel (%p33) target = $region17
  $region16: #{dice_loss.1} parent=0 // pred_region
    %v36 = vld [vmem:[#allocation2] sm:$0xff]
    %37 = vadd.xlane.f32.xlu0 %v36
    %v38 = vpop.xlane.xlu0 %37
    %v39 = vrot.slane %v38, 4
    %v40 = vadd.f32 %v38, %v39
    %v41 = vrot.slane %v40, 2
    %v42 = vadd.f32 %v40, %v41
    %v43 = vrot.slane %v42, 1
    %v44 = vadd.f32 %v42, %v43
    %s45 = vtos %v44
    %v46 = vld [vmem:[#allocation3] sm:$0xff]
    %47 = vadd.xlane.f32.xlu0 %v46
    %v48 = vpop.xlane.xlu0 %47
    %v49 = vrot.slane %v48, 4
    %v50 = vadd.f32 %v48, %v49
    %v51 = vrot.slane %v50, 2
    %v52 = vadd.f32 %v50, %v51
    %v53 = vrot.slane %v52, 1
    %v54 = vadd.f32 %v52, %v53
    %s55 = vtos %v54
    %v56 = vlaneseq
    %v57 = vshrl.u32 %v56, 7
    %v58 = vlaneseq
    %v59 = vand.u32 %v58, 127
    %vm60 = vcmp.eq.s32.totalorder %v57, 0
    %vm61 = vcmp.eq.s32.totalorder %v59, 0
    %vm62 = vmand %vm60, %vm61
    %v63 = vstv %s45
    %v64 = vsel %vm62, %v63, 0.0
    %vm65 = vcmp.eq.s32.totalorder %v59, 1
    %vm66 = vmand %vm60, %vm65
    %v67 = vstv %s55
    %v68 = vsel %vm66, %v67, 0.0
    %v69 = vadd.f32 %v64, %v68
    %70 = vst [vmem:[%s2] sm:$0xff] %v69
  $region17: #{dice_loss.1} parent=0 // pred_fallthru
    _
  // Predicated region
  $region18: #{dice_loss.1} parent=0 // pred_check
    _
  $region19: #{dice_loss.1} parent=0 // pred_check_branch
    %72 = sbr.rel (0) target = $region21
  $region20: #{dice_loss.1} parent=0 // pred_region
    _
  $region21: #{dice_loss.1} parent=0 // pred_fallthru
    _
  // Predicated region
  $region22: #{dice_loss.1} parent=0 // pred_check
    _
  $region23: #{dice_loss.1} parent=0 // pred_check_branch
    %74 = sbr.rel (0) target = $region25
  $region24: #{dice_loss.1} parent=0 // pred_region
    _
  $region25: #{dice_loss.1} parent=0 // pred_fallthru
    _

</llo_original>
